<compile_context>
chip_gen: v7x
topology: tpu7x:2x2x1
jax: 0.10.0
libtpu: 0.0.40
codegen_flags: <defaults>
</compile_context>

<pallas_src>
import functools

import jax
import jax.numpy as jnp
from jax.experimental import pallas as pl
from jax.experimental.pallas import tpu as pltpu

_EPS = 1e-5               # nn.GroupNorm default eps
_SQRT1_2 = 0.7071067811865476


def _erf_poly(z):
    # Abramowitz & Stegun 7.1.26 (max abs err ~1.5e-7) with the divide replaced
    # by an EUP approximate reciprocal (runs in its own bundle slot; added
    # error ~1e-4, negligible next to the bf16 MXU operand rounding).
    p = 0.3275911
    a1, a2, a3, a4, a5 = (0.254829592, -0.284496736, 1.421413741,
                          -1.453152027, 1.061405429)
    az = jnp.abs(z)
    t = pl.reciprocal(1.0 + p * az, approx=True)
    poly = ((((a5 * t + a4) * t + a3) * t + a2) * t + a1) * t
    y = 1.0 - poly * jnp.exp(-az * az)
    return jnp.where(z < 0, -y, y)


def _gelu_exact(x):
    # nn.GELU() default (erf form), evaluated in f32.
    return 0.5 * x * (1.0 + _erf_poly(x * _SQRT1_2))


def _banded_conv_weights(w, W):
    """OIHW 3x3 conv weight -> (3*W*Cin, W*Cout) stacked row-tap matrices.

    Row-tap block ty multiplies input row r+ty-1.  The width taps and the
    width zero padding are baked into a block-banded (W*Cin, W*Cout) matrix,
    so the whole conv becomes a single lane-dense matmul.
    """
    Cout, Cin, KH, KW = w.shape
    assert (KH, KW) == (3, 3), "only 3x3 convs supported"
    mats = []
    for ty in range(KH):
        m = jnp.zeros((W * Cin, W * Cout), jnp.float32)
        for tx in range(KW):
            # band[j', j] = 1  iff  j' = j + tx - 1  (input col j' -> output col j)
            band = jnp.eye(W, k=1 - tx, dtype=jnp.float32)
            m = m + jnp.kron(band, w[:, :, ty, tx].T.astype(jnp.float32))
        mats.append(m)
    return jnp.concatenate(mats, axis=0)          # (3*W*Cin, W*Cout)


def conv_block_kernel(x_ref, w1_ref, g1_ref, b1_ref, w2_ref, g2_ref, b2_ref,
                      out_ref, col1_ref, col2_ref, *, H, WCi, WCm, WCo, BB):
    f32 = jnp.float32

    def row_taps(img32):
        """img32: (H, wc) f32 image rows.  Returns (up, down) with
        up[r] = img[r-1] (zero at r=0) and down[r] = img[r+1] (zero at r=H-1).
        pltpu.roll (XLU) + iota border mask -> all later stores stay full-tile,
        aligned and dense (no padded scratch, no border re-zeroing)."""
        row = jax.lax.broadcasted_iota(jnp.int32, img32.shape, 0)
        up = jnp.where(row > 0, pltpu.roll(img32, shift=1, axis=0), 0.0)
        down = jnp.where(row < H - 1, pltpu.roll(img32, shift=H - 1, axis=0), 0.0)
        return up, down

    def groupnorm1(h, g_row, b_row):
        # GroupNorm(num_groups=1): mean/var over all C*H*W elements of one
        # sample, single pass in f32 (E[x^2] - mean^2, clamped at 0).
        n = float(h.shape[0] * h.shape[1])
        mean = jnp.sum(h) / n
        var = jnp.maximum(jnp.sum(h * h) / n - mean * mean, 0.0)
        inv = jax.lax.rsqrt(var + _EPS)
        return (h - mean) * inv * g_row + b_row

    # ---- im2col for conv1: 3 aligned lane-dense stores per image ------------
    for bb in range(BB):
        base = bb * H
        x_img = x_ref[bb]                                    # (H, WCi) bf16
        up, down = row_taps(x_img.astype(f32))               # exact bf16 roundtrip
        col1_ref[base:base + H, 0:WCi] = up.astype(col1_ref.dtype)
        col1_ref[base:base + H, WCi:2 * WCi] = x_img
        col1_ref[base:base + H, 2 * WCi:3 * WCi] = down.astype(col1_ref.dtype)

    # ---- conv1: ONE matmul for the whole batch block (M = BB*H) -------------
    h1_all = jnp.dot(col1_ref[...], w1_ref[...], preferred_element_type=f32)

    # ---- per-image GroupNorm(1) + GELU, scattered into conv2's im2col -------
    # (BB is small here; for BB in the 8-32 range switch these unrolled Python
    #  loops to lax.fori_loop(..., unroll=True) over row slices to keep vreg
    #  pressure flat.)
    g1, b1 = g1_ref[...], b1_ref[...]
    for bb in range(BB):
        base = bb * H
        h = _gelu_exact(groupnorm1(h1_all[base:base + H, :], g1, b1))   # f32
        up, down = row_taps(h)
        col2_ref[base:base + H, 0:WCm] = up.astype(col2_ref.dtype)
        col2_ref[base:base + H, WCm:2 * WCm] = h.astype(col2_ref.dtype)
        col2_ref[base:base + H, 2 * WCm:3 * WCm] = down.astype(col2_ref.dtype)

    # ---- conv2: ONE matmul for the whole batch block -------------------------
    h2_all = jnp.dot(col2_ref[...], w2_ref[...], preferred_element_type=f32)

    # ---- per-image GroupNorm(1); lane-dense (H, W*Cout) f32 stores -----------
    g2, b2 = g2_ref[...], b2_ref[...]
    for bb in range(BB):
        base = bb * H
        out_ref[bb] = groupnorm1(h2_all[base:base + H, :], g2, b2)


def prepare_conv_block_params(params, W, mxu_dtype=jnp.bfloat16):
    """One-time parameter prep (hoisted out of the per-call forward): build the
    block-banded im2col weight matrices (bf16 MXU operands) and tile the
    GroupNorm affine params to the (W*C) lane layout (f32)."""
    Cmid, Cout = int(params["w1"].shape[0]), int(params["w2"].shape[0])
    w1b = _banded_conv_weights(params["w1"], W).astype(mxu_dtype)   # (3*W*Cin,  W*Cmid)
    w2b = _banded_conv_weights(params["w2"], W).astype(mxu_dtype)   # (3*W*Cmid, W*Cout)
    g1t = jnp.tile(params["g1"].astype(jnp.float32), W).reshape(1, W * Cmid)
    b1t = jnp.tile(params["b1"].astype(jnp.float32), W).reshape(1, W * Cmid)
    g2t = jnp.tile(params["g2"].astype(jnp.float32), W).reshape(1, W * Cout)
    b2t = jnp.tile(params["b2"].astype(jnp.float32), W).reshape(1, W * Cout)
    return dict(w1b=w1b, g1t=g1t, b1t=b1t, w2b=w2b, g2t=g2t, b2t=b2t)


def _auto_batch_block(B):
    # Largest divisor of B that still leaves >= 2 grid steps, so the "parallel"
    # batch axis shards across v7x's two TensorCores (B == 1 -> single step).
    best = 1
    for d in range(1, B + 1):
        if B % d == 0 and (B // d >= 2 or B == 1):
            best = d
    return best


@functools.partial(jax.jit, static_argnames=("batch_block",))
def conv_block_forward(x_nchw, prepped, *, batch_block=None):
    """x_nchw: (B, Cin, H, W) f32 -> (B, Cout, H, W) f32 (ConvBlock forward)."""
    B, Cin, H, W = x_nchw.shape
    w1b, w2b = prepped["w1b"], prepped["w2b"]
    g1t, b1t = prepped["g1t"], prepped["b1t"]
    g2t, b2t = prepped["g2t"], prepped["b2t"]
    mxu_dtype = w1b.dtype
    WCi = W * Cin
    WCm = int(g1t.shape[-1])
    WCo = int(g2t.shape[-1])
    Cout = WCo // W
    if w1b.shape != (3 * WCi, WCm) or w2b.shape != (3 * WCm, WCo):
        raise ValueError("prepared params do not match the input shape")

    BB = int(batch_block) if batch_block else _auto_batch_block(B)
    if B % BB != 0:
        raise ValueError(f"batch_block={BB} must divide B={B}")

    # Single NCHW -> (B, H, W*Cin) relayout; bf16 halves the input DMA and the
    # im2col store traffic (the MXU operand is bf16 anyway -> bit-identical).
    x_rows = jnp.transpose(x_nchw, (0, 2, 3, 1)).reshape(B, H, WCi).astype(mxu_dtype)

    kernel = functools.partial(conv_block_kernel,
                               H=H, WCi=WCi, WCm=WCm, WCo=WCo, BB=BB)

    out_rows = pl.pallas_call(
        kernel,
        out_shape=jax.ShapeDtypeStruct((B, H, WCo), jnp.float32),
        grid_spec=pltpu.PrefetchScalarGridSpec(
            num_scalar_prefetch=0,
            grid=(B // BB,),
            in_specs=[
                pl.BlockSpec((BB, H, WCi), lambda b: (b, 0, 0)),
                pl.BlockSpec((3 * WCi, WCm), lambda b: (0, 0)),
                pl.BlockSpec((1, WCm), lambda b: (0, 0)),
                pl.BlockSpec((1, WCm), lambda b: (0, 0)),
                pl.BlockSpec((3 * WCm, WCo), lambda b: (0, 0)),
                pl.BlockSpec((1, WCo), lambda b: (0, 0)),
                pl.BlockSpec((1, WCo), lambda b: (0, 0)),
            ],
            out_specs=pl.BlockSpec((BB, H, WCo), lambda b: (b, 0, 0)),
            scratch_shapes=[
                pltpu.VMEM((BB * H, 3 * WCi), mxu_dtype),   # conv1 im2col (3 row taps)
                pltpu.VMEM((BB * H, 3 * WCm), mxu_dtype),   # conv2 im2col
            ],
        ),
        compiler_params=pltpu.CompilerParams(
            dimension_semantics=("parallel",),        # >=2 grid steps -> both v7x TCs
            vmem_limit_bytes=32 * 1024 * 1024,        # explicit (v5e default is 16MiB)
        ),
    )(x_rows, w1b, g1t, b1t, w2b, g2t, b2t)

    # Undo the lane-dense layout outside the kernel: (B, H, W*Cout) -> NCHW.
    return jnp.transpose(out_rows.reshape(B, H, W, Cout), (0, 3, 1, 2))


def conv_block_reference(x, params, mxu_dtype=jnp.float32):
    """Pure-JAX NCHW reference mirroring the PyTorch ConvBlock.

    With mxu_dtype=bfloat16 it reproduces the kernel's MXU operand rounding
    (bf16 conv operands, f32 accumulation, f32 GroupNorm/GELU).
    """
    def conv(z, w):
        return jax.lax.conv_general_dilated(
            z.astype(mxu_dtype), w.astype(mxu_dtype), (1, 1), "SAME",
            dimension_numbers=("NCHW", "OIHW", "NCHW"),
            preferred_element_type=jnp.float32)

    def gn(z, g, b):
        mean = z.mean(axis=(1, 2, 3), keepdims=True)
        var = ((z - mean) ** 2).mean(axis=(1, 2, 3), keepdims=True)
        zn = (z - mean) * jax.lax.rsqrt(var + _EPS)
        return zn * g[None, :, None, None] + b[None, :, None, None]

    h = conv(x, params["w1"])
    h = gn(h, params["g1"], params["b1"])
    h = jax.nn.gelu(h, approximate=False)      # exact (erf) GELU, like nn.GELU()
    h = conv(h, params["w2"])
    h = gn(h, params["g2"], params["b2"])
    return h


if __name__ == "__main__":
    B, Cin, H, W = 2, 4, 16, 16
    Cout = 8
    Cmid = Cout // 2

    key = jax.random.PRNGKey(0)
    ks = jax.random.split(key, 8)
    x = jax.random.normal(ks[0], (B, Cin, H, W), jnp.float32)
    params = dict(
        w1=0.3 * jax.random.normal(ks[1], (Cmid, Cin, 3, 3), jnp.float32),
        g1=1.0 + 0.1 * jax.random.normal(ks[2], (Cmid,), jnp.float32),
        b1=0.1 * jax.random.normal(ks[3], (Cmid,), jnp.float32),
        w2=0.3 * jax.random.normal(ks[4], (Cout, Cmid, 3, 3), jnp.float32),
        g2=1.0 + 0.1 * jax.random.normal(ks[5], (Cout,), jnp.float32),
        b2=0.1 * jax.random.normal(ks[6], (Cout,), jnp.float32),
    )

    prepped = prepare_conv_block_params(params, W)   # one-time setup (hoisted)

    # --- B=2 (batch_block=1, grid=2): one image per grid step / TensorCore ---
    out = jax.block_until_ready(conv_block_forward(x, prepped))
    assert out.shape == (B, Cout, H, W), out.shape

    # Tight check vs a reference with matched MXU numerics (bf16 operands, f32
    # accumulation / GroupNorm / GELU).  Tolerance covers the A&S erf poly +
    # approx-reciprocal (~1e-3) on top of accumulation-order differences.
    ref_matched = conv_block_reference(x, params, mxu_dtype=jnp.bfloat16)
    err_matched = float(jnp.max(jnp.abs(out - ref_matched)))
    assert jnp.allclose(out, ref_matched, atol=1e-2, rtol=1e-2), (
        f"matched-precision max_err={err_matched}")

    # Sanity check vs the full-f32 PyTorch-equivalent module: residual gap is
    # bf16 MXU operand rounding only (expected ~1e-2).
    ref_f32 = conv_block_reference(x, params, mxu_dtype=jnp.float32)
    err_f32 = float(jnp.max(jnp.abs(out - ref_f32)))
    assert err_f32 < 0.1, f"f32 module parity max_err={err_f32}"

    # --- B=8 (auto batch_block=4, grid=2): exercises the batched-M matmul ----
    x8 = jax.random.normal(ks[7], (8, Cin, H, W), jnp.float32)
    out8 = jax.block_until_ready(conv_block_forward(x8, prepped))
    ref8 = conv_block_reference(x8, params, mxu_dtype=jnp.bfloat16)
    err8 = float(jnp.max(jnp.abs(out8 - ref8)))
    assert jnp.allclose(out8, ref8, atol=1e-2, rtol=1e-2), (
        f"batched-M max_err={err8}")

    print("KERNEL_OK")
</pallas_src>

<mosaic_0001>
module attributes {stable_mosaic.version = 11 : i64} {
  func.func @conv_block_kernel(%arg0: i32, %arg1: memref<1x16x64xbf16, #tpu.memory_space<vmem>>, %arg2: memref<192x64xbf16, #tpu.memory_space<vmem>>, %arg3: memref<1x64xf32, #tpu.memory_space<vmem>>, %arg4: memref<1x64xf32, #tpu.memory_space<vmem>>, %arg5: memref<192x128xbf16, #tpu.memory_space<vmem>>, %arg6: memref<1x128xf32, #tpu.memory_space<vmem>>, %arg7: memref<1x128xf32, #tpu.memory_space<vmem>>, %arg8: memref<1x16x128xf32, #tpu.memory_space<vmem>>, %arg9: memref<16x192xbf16, #tpu.memory_space<vmem>>, %arg10: memref<16x192xbf16, #tpu.memory_space<vmem>>) attributes {dimension_semantics = [#tpu.dimension_semantics<parallel>], iteration_bounds = array<i64: 2>, scalar_prefetch = 0 : i64, scratch_operands = 2 : i64, tpu.core_type = #tpu.core_type<tc>, window_params = [{transform_indices = @transform_0, window_bounds = array<i64: 1, 16, 64>}, {pipeline_mode = #tpu.pipeline_mode<synchronous>, transform_indices = @transform_1, window_bounds = array<i64: 192, 64>}, {pipeline_mode = #tpu.pipeline_mode<synchronous>, transform_indices = @transform_2, window_bounds = array<i64: 1, 64>}, {pipeline_mode = #tpu.pipeline_mode<synchronous>, transform_indices = @transform_3, window_bounds = array<i64: 1, 64>}, {pipeline_mode = #tpu.pipeline_mode<synchronous>, transform_indices = @transform_4, window_bounds = array<i64: 192, 128>}, {pipeline_mode = #tpu.pipeline_mode<synchronous>, transform_indices = @transform_5, window_bounds = array<i64: 1, 128>}, {pipeline_mode = #tpu.pipeline_mode<synchronous>, transform_indices = @transform_6, window_bounds = array<i64: 1, 128>}, {transform_indices = @transform_7, window_bounds = array<i64: 1, 16, 128>}]} {
    %c0 = arith.constant 0 : index
    %c0_0 = arith.constant 0 : index
    %c0_1 = arith.constant 0 : index
    %0 = vector.load %arg1[%c0, %c0_0, %c0_1] : memref<1x16x64xbf16, #tpu.memory_space<vmem>>, vector<1x16x64xbf16>
    %1 = vector.shape_cast %0 : vector<1x16x64xbf16> to vector<16x64xbf16>
    %2 = arith.extf %1 : vector<16x64xbf16> to vector<16x64xf32>
    %3 = tpu.iota {dimensions = array<i32: 0>} : vector<16x64xi32>
    %c0_i32 = arith.constant 0 : i32
    %4 = vector.broadcast %c0_i32 : i32 to vector<16x64xi32>
    %5 = arith.cmpi sgt, %3, %4 : vector<16x64xi32>
    %c1_i32 = arith.constant 1 : i32
    %6 = tpu.dynamic_rotate %2 by %c1_i32 dim 0 : vector<16x64xf32>, i32 -> vector<16x64xf32>
    %cst = arith.constant 0.000000e+00 : f32
    %7 = vector.broadcast %cst : f32 to vector<16x64xf32>
    %8 = arith.select %5, %6, %7 : vector<16x64xi1>, vector<16x64xf32>
    %c15_i32 = arith.constant 15 : i32
    %9 = vector.broadcast %c15_i32 : i32 to vector<16x64xi32>
    %10 = arith.cmpi slt, %3, %9 : vector<16x64xi32>
    %c15_i32_2 = arith.constant 15 : i32
    %11 = tpu.dynamic_rotate %2 by %c15_i32_2 dim 0 : vector<16x64xf32>, i32 -> vector<16x64xf32>
    %cst_3 = arith.constant 0.000000e+00 : f32
    %12 = vector.broadcast %cst_3 : f32 to vector<16x64xf32>
    %13 = arith.select %10, %11, %12 : vector<16x64xi1>, vector<16x64xf32>
    %14 = arith.truncf %8 : vector<16x64xf32> to vector<16x64xbf16>
    %c0_4 = arith.constant 0 : index
    %c0_5 = arith.constant 0 : index
    %15 = vector.load %arg9[%c0_4, %c0_5] : memref<16x192xbf16, #tpu.memory_space<vmem>>, vector<16x64xbf16>
    tpu.vector_store %arg9[%c0_4, %c0_5], %14 {strides = array<i32>} : memref<16x192xbf16, #tpu.memory_space<vmem>>, vector<16x64xbf16>,
    %c0_6 = arith.constant 0 : index
    %c64 = arith.constant 64 : index
    %16 = vector.load %arg9[%c0_6, %c64] : memref<16x192xbf16, #tpu.memory_space<vmem>>, vector<16x64xbf16>
    tpu.vector_store %arg9[%c0_6, %c64], %1 {strides = array<i32>} : memref<16x192xbf16, #tpu.memory_space<vmem>>, vector<16x64xbf16>,
    %17 = arith.truncf %13 : vector<16x64xf32> to vector<16x64xbf16>
    %c0_7 = arith.constant 0 : index
    %c128 = arith.constant 128 : index
    %18 = vector.load %arg9[%c0_7, %c128] : memref<16x192xbf16, #tpu.memory_space<vmem>>, vector<16x64xbf16>
    tpu.vector_store %arg9[%c0_7, %c128], %17 {strides = array<i32>} : memref<16x192xbf16, #tpu.memory_space<vmem>>, vector<16x64xbf16>,
    %c0_8 = arith.constant 0 : index
    %c0_9 = arith.constant 0 : index
    %19 = vector.load %arg9[%c0_8, %c0_9] : memref<16x192xbf16, #tpu.memory_space<vmem>>, vector<16x192xbf16>
    %c0_10 = arith.constant 0 : index
    %c0_11 = arith.constant 0 : index
    %20 = vector.load %arg2[%c0_10, %c0_11] : memref<192x64xbf16, #tpu.memory_space<vmem>>, vector<192x64xbf16>
    %cst_12 = arith.constant dense<0.000000e+00> : vector<16x64xf32>
    %21 = tpu.matmul %19, %20, %cst_12 {dimension_numbers = #tpu.dot_dimension_numbers<[1], [0], [0], [1], [0, 0, 1, 1], [], []>} : vector<16x192xbf16>, vector<192x64xbf16>, vector<16x64xf32> -> vector<16x64xf32>
    %c0_13 = arith.constant 0 : index
    %c0_14 = arith.constant 0 : index
    %22 = vector.load %arg3[%c0_13, %c0_14] : memref<1x64xf32, #tpu.memory_space<vmem>>, vector<1x64xf32>
    %c0_15 = arith.constant 0 : index
    %c0_16 = arith.constant 0 : index
    %23 = vector.load %arg4[%c0_15, %c0_16] : memref<1x64xf32, #tpu.memory_space<vmem>>, vector<1x64xf32>
    %24 = vector.shape_cast %21 : vector<16x64xf32> to vector<1x16x64xf32>
    %cst_17 = arith.constant dense<0.000000e+00> : vector<1xf32>
    %25 = vector.multi_reduction <add>, %24, %cst_17 [1, 2] : vector<1x16x64xf32> to vector<1xf32>
    %26 = vector.shape_cast %25 : vector<1xf32> to vector<1x1x1xf32>
    %27 = vector.extract %26[0, 0, 0] : f32 from vector<1x1x1xf32>
    %cst_18 = arith.constant 1.024000e+03 : f32
    %28 = arith.divf %27, %cst_18 : f32
    %29 = arith.mulf %21, %21 : vector<16x64xf32>
    %30 = vector.shape_cast %29 : vector<16x64xf32> to vector<1x16x64xf32>
    %cst_19 = arith.constant dense<0.000000e+00> : vector<1xf32>
    %31 = vector.multi_reduction <add>, %30, %cst_19 [1, 2] : vector<1x16x64xf32> to vector<1xf32>
    %32 = vector.shape_cast %31 : vector<1xf32> to vector<1x1x1xf32>
    %33 = vector.extract %32[0, 0, 0] : f32 from vector<1x1x1xf32>
    %cst_20 = arith.constant 1.024000e+03 : f32
    %34 = arith.divf %33, %cst_20 : f32
    %35 = arith.mulf %28, %28 : f32
    %36 = arith.subf %34, %35 : f32
    %cst_21 = arith.constant 0.000000e+00 : f32
    %37 = arith.maximumf %36, %cst_21 : f32
    %cst_22 = arith.constant 9.99999974E-6 : f32
    %38 = arith.addf %37, %cst_22 : f32
    %39 = math.rsqrt %38 : f32
    %40 = vector.broadcast %28 : f32 to vector<16x64xf32>
    %41 = arith.subf %21, %40 : vector<16x64xf32>
    %42 = vector.broadcast %39 : f32 to vector<16x64xf32>
    %43 = arith.mulf %41, %42 : vector<16x64xf32>
    %44 = vector.broadcast %22 : vector<1x64xf32> to vector<16x64xf32>
    %45 = arith.mulf %43, %44 : vector<16x64xf32>
    %46 = vector.broadcast %23 : vector<1x64xf32> to vector<16x64xf32>
    %47 = arith.addf %45, %46 : vector<16x64xf32>
    %cst_23 = arith.constant 5.000000e-01 : f32
    %48 = vector.broadcast %cst_23 : f32 to vector<16x64xf32>
    %49 = arith.mulf %48, %47 : vector<16x64xf32>
    %cst_24 = arith.constant 0.707106769 : f32
    %50 = vector.broadcast %cst_24 : f32 to vector<16x64xf32>
    %51 = arith.mulf %47, %50 : vector<16x64xf32>
    %52 = math.absf %51 : vector<16x64xf32>
    %cst_25 = arith.constant 0.327591091 : f32
    %53 = vector.broadcast %cst_25 : f32 to vector<16x64xf32>
    %54 = arith.mulf %53, %52 : vector<16x64xf32>
    %cst_26 = arith.constant 1.000000e+00 : f32
    %55 = vector.broadcast %cst_26 : f32 to vector<16x64xf32>
    %56 = arith.addf %55, %54 : vector<16x64xf32>
    %57 = tpu.reciprocal %56 {approx = true} : vector<16x64xf32> -> vector<16x64xf32>
    %cst_27 = arith.constant 1.06140542 : f32
    %58 = vector.broadcast %cst_27 : f32 to vector<16x64xf32>
    %59 = arith.mulf %58, %57 : vector<16x64xf32>
    %cst_28 = arith.constant -1.45315206 : f32
    %60 = vector.broadcast %cst_28 : f32 to vector<16x64xf32>
    %61 = arith.addf %59, %60 : vector<16x64xf32>
    %62 = arith.mulf %61, %57 : vector<16x64xf32>
    %cst_29 = arith.constant 1.42141378 : f32
    %63 = vector.broadcast %cst_29 : f32 to vector<16x64xf32>
    %64 = arith.addf %62, %63 : vector<16x64xf32>
    %65 = arith.mulf %64, %57 : vector<16x64xf32>
    %cst_30 = arith.constant -0.284496725 : f32
    %66 = vector.broadcast %cst_30 : f32 to vector<16x64xf32>
    %67 = arith.addf %65, %66 : vector<16x64xf32>
    %68 = arith.mulf %67, %57 : vector<16x64xf32>
    %cst_31 = arith.constant 0.254829586 : f32
    %69 = vector.broadcast %cst_31 : f32 to vector<16x64xf32>
    %70 = arith.addf %68, %69 : vector<16x64xf32>
    %71 = arith.mulf %70, %57 : vector<16x64xf32>
    %cst_32 = arith.constant 0.000000e+00 : f32
    %72 = vector.broadcast %cst_32 : f32 to vector<16x64xf32>
    %73 = arith.subf %72, %52 : vector<16x64xf32>
    %74 = arith.mulf %73, %52 : vector<16x64xf32>
    %75 = math.exp %74 : vector<16x64xf32>
    %76 = arith.mulf %71, %75 : vector<16x64xf32>
    %cst_33 = arith.constant 1.000000e+00 : f32
    %77 = vector.broadcast %cst_33 : f32 to vector<16x64xf32>
    %78 = arith.subf %77, %76 : vector<16x64xf32>
    %cst_34 = arith.constant 0.000000e+00 : f32
    %79 = vector.broadcast %cst_34 : f32 to vector<16x64xf32>
    %80 = arith.cmpf olt, %51, %79 : vector<16x64xf32>
    %cst_35 = arith.constant 0.000000e+00 : f32
    %81 = vector.broadcast %cst_35 : f32 to vector<16x64xf32>
    %82 = arith.subf %81, %78 : vector<16x64xf32>
    %83 = arith.select %80, %82, %78 : vector<16x64xi1>, vector<16x64xf32>
    %cst_36 = arith.constant 1.000000e+00 : f32
    %84 = vector.broadcast %cst_36 : f32 to vector<16x64xf32>
    %85 = arith.addf %84, %83 : vector<16x64xf32>
    %86 = arith.mulf %49, %85 : vector<16x64xf32>
    %87 = tpu.iota {dimensions = array<i32: 0>} : vector<16x64xi32>
    %c0_i32_37 = arith.constant 0 : i32
    %88 = vector.broadcast %c0_i32_37 : i32 to vector<16x64xi32>
    %89 = arith.cmpi sgt, %87, %88 : vector<16x64xi32>
    %c1_i32_38 = arith.constant 1 : i32
    %90 = tpu.dynamic_rotate %86 by %c1_i32_38 dim 0 : vector<16x64xf32>, i32 -> vector<16x64xf32>
    %cst_39 = arith.constant 0.000000e+00 : f32
    %91 = vector.broadcast %cst_39 : f32 to vector<16x64xf32>
    %92 = arith.select %89, %90, %91 : vector<16x64xi1>, vector<16x64xf32>
    %c15_i32_40 = arith.constant 15 : i32
    %93 = vector.broadcast %c15_i32_40 : i32 to vector<16x64xi32>
    %94 = arith.cmpi slt, %87, %93 : vector<16x64xi32>
    %c15_i32_41 = arith.constant 15 : i32
    %95 = tpu.dynamic_rotate %86 by %c15_i32_41 dim 0 : vector<16x64xf32>, i32 -> vector<16x64xf32>
    %cst_42 = arith.constant 0.000000e+00 : f32
    %96 = vector.broadcast %cst_42 : f32 to vector<16x64xf32>
    %97 = arith.select %94, %95, %96 : vector<16x64xi1>, vector<16x64xf32>
    %98 = arith.truncf %92 : vector<16x64xf32> to vector<16x64xbf16>
    %c0_43 = arith.constant 0 : index
    %c0_44 = arith.constant 0 : index
    %99 = vector.load %arg10[%c0_43, %c0_44] : memref<16x192xbf16, #tpu.memory_space<vmem>>, vector<16x64xbf16>
    tpu.vector_store %arg10[%c0_43, %c0_44], %98 {strides = array<i32>} : memref<16x192xbf16, #tpu.memory_space<vmem>>, vector<16x64xbf16>,
    %100 = arith.truncf %86 : vector<16x64xf32> to vector<16x64xbf16>
    %c0_45 = arith.constant 0 : index
    %c64_46 = arith.constant 64 : index
    %101 = vector.load %arg10[%c0_45, %c64_46] : memref<16x192xbf16, #tpu.memory_space<vmem>>, vector<16x64xbf16>
    tpu.vector_store %arg10[%c0_45, %c64_46], %100 {strides = array<i32>} : memref<16x192xbf16, #tpu.memory_space<vmem>>, vector<16x64xbf16>,
    %102 = arith.truncf %97 : vector<16x64xf32> to vector<16x64xbf16>
    %c0_47 = arith.constant 0 : index
    %c128_48 = arith.constant 128 : index
    %103 = vector.load %arg10[%c0_47, %c128_48] : memref<16x192xbf16, #tpu.memory_space<vmem>>, vector<16x64xbf16>
    tpu.vector_store %arg10[%c0_47, %c128_48], %102 {strides = array<i32>} : memref<16x192xbf16, #tpu.memory_space<vmem>>, vector<16x64xbf16>,
    %c0_49 = arith.constant 0 : index
    %c0_50 = arith.constant 0 : index
    %104 = vector.load %arg10[%c0_49, %c0_50] : memref<16x192xbf16, #tpu.memory_space<vmem>>, vector<16x192xbf16>
    %c0_51 = arith.constant 0 : index
    %c0_52 = arith.constant 0 : index
    %105 = vector.load %arg5[%c0_51, %c0_52] : memref<192x128xbf16, #tpu.memory_space<vmem>>, vector<192x128xbf16>
    %cst_53 = arith.constant dense<0.000000e+00> : vector<16x128xf32>
    %106 = tpu.matmul %104, %105, %cst_53 {dimension_numbers = #tpu.dot_dimension_numbers<[1], [0], [0], [1], [0, 0, 1, 1], [], []>} : vector<16x192xbf16>, vector<192x128xbf16>, vector<16x128xf32> -> vector<16x128xf32>
    %c0_54 = arith.constant 0 : index
    %c0_55 = arith.constant 0 : index
    %107 = vector.load %arg6[%c0_54, %c0_55] : memref<1x128xf32, #tpu.memory_space<vmem>>, vector<1x128xf32>
    %c0_56 = arith.constant 0 : index
    %c0_57 = arith.constant 0 : index
    %108 = vector.load %arg7[%c0_56, %c0_57] : memref<1x128xf32, #tpu.memory_space<vmem>>, vector<1x128xf32>
    %109 = vector.shape_cast %106 : vector<16x128xf32> to vector<1x16x128xf32>
    %cst_58 = arith.constant dense<0.000000e+00> : vector<1xf32>
    %110 = vector.multi_reduction <add>, %109, %cst_58 [1, 2] : vector<1x16x128xf32> to vector<1xf32>
    %111 = vector.shape_cast %110 : vector<1xf32> to vector<1x1x1xf32>
    %112 = vector.extract %111[0, 0, 0] : f32 from vector<1x1x1xf32>
    %cst_59 = arith.constant 2.048000e+03 : f32
    %113 = arith.divf %112, %cst_59 : f32
    %114 = arith.mulf %106, %106 : vector<16x128xf32>
    %115 = vector.shape_cast %114 : vector<16x128xf32> to vector<1x16x128xf32>
    %cst_60 = arith.constant dense<0.000000e+00> : vector<1xf32>
    %116 = vector.multi_reduction <add>, %115, %cst_60 [1, 2] : vector<1x16x128xf32> to vector<1xf32>
    %117 = vector.shape_cast %116 : vector<1xf32> to vector<1x1x1xf32>
    %118 = vector.extract %117[0, 0, 0] : f32 from vector<1x1x1xf32>
    %cst_61 = arith.constant 2.048000e+03 : f32
    %119 = arith.divf %118, %cst_61 : f32
    %120 = arith.mulf %113, %113 : f32
    %121 = arith.subf %119, %120 : f32
    %cst_62 = arith.constant 0.000000e+00 : f32
    %122 = arith.maximumf %121, %cst_62 : f32
    %cst_63 = arith.constant 9.99999974E-6 : f32
    %123 = arith.addf %122, %cst_63 : f32
    %124 = math.rsqrt %123 : f32
    %125 = vector.broadcast %113 : f32 to vector<16x128xf32>
    %126 = arith.subf %106, %125 : vector<16x128xf32>
    %127 = vector.broadcast %124 : f32 to vector<16x128xf32>
    %128 = arith.mulf %126, %127 : vector<16x128xf32>
    %129 = vector.broadcast %107 : vector<1x128xf32> to vector<16x128xf32>
    %130 = arith.mulf %128, %129 : vector<16x128xf32>
    %131 = vector.broadcast %108 : vector<1x128xf32> to vector<16x128xf32>
    %132 = arith.addf %130, %131 : vector<16x128xf32>
    %c0_64 = arith.constant 0 : index
    %c0_65 = arith.constant 0 : index
    %c0_66 = arith.constant 0 : index
    %133 = vector.load %arg8[%c0_64, %c0_65, %c0_66] : memref<1x16x128xf32, #tpu.memory_space<vmem>>, vector<1x16x128xf32>
    %134 = vector.shape_cast %133 : vector<1x16x128xf32> to vector<16x128xf32>
    %135 = vector.shape_cast %132 : vector<16x128xf32> to vector<1x16x128xf32>
    tpu.vector_store %arg8[%c0_64, %c0_65, %c0_66], %135 {strides = array<i32>} : memref<1x16x128xf32, #tpu.memory_space<vmem>>, vector<1x16x128xf32>,
    return
  }
  func.func @transform_0(%arg0: i32) -> (i32, i32, i32) {
    %c0_i32 = arith.constant 0 : i32
    %c0_i32_0 = arith.constant 0 : i32
    %c0_i32_1 = arith.constant 0 : i32
    return %arg0, %c0_i32, %c0_i32_0 : i32, i32, i32
  }
  func.func @transform_1(%arg0: i32) -> (i32, i32) {
    %c0_i32 = arith.constant 0 : i32
    %c0_i32_0 = arith.constant 0 : i32
    %c0_i32_1 = arith.constant 0 : i32
    return %c0_i32, %c0_i32_0 : i32, i32
  }
  func.func @transform_2(%arg0: i32) -> (i32, i32) {
    %c0_i32 = arith.constant 0 : i32
    %c0_i32_0 = arith.constant 0 : i32
    %c0_i32_1 = arith.constant 0 : i32
    return %c0_i32, %c0_i32_0 : i32, i32
  }
  func.func @transform_3(%arg0: i32) -> (i32, i32) {
    %c0_i32 = arith.constant 0 : i32
    %c0_i32_0 = arith.constant 0 : i32
    %c0_i32_1 = arith.constant 0 : i32
    return %c0_i32, %c0_i32_0 : i32, i32
  }
  func.func @transform_4(%arg0: i32) -> (i32, i32) {
    %c0_i32 = arith.constant 0 : i32
    %c0_i32_0 = arith.constant 0 : i32
    %c0_i32_1 = arith.constant 0 : i32
    return %c0_i32, %c0_i32_0 : i32, i32
  }
  func.func @transform_5(%arg0: i32) -> (i32, i32) {
    %c0_i32 = arith.constant 0 : i32
    %c0_i32_0 = arith.constant 0 : i32
    %c0_i32_1 = arith.constant 0 : i32
    return %c0_i32, %c0_i32_0 : i32, i32
  }
  func.func @transform_6(%arg0: i32) -> (i32, i32) {
    %c0_i32 = arith.constant 0 : i32
    %c0_i32_0 = arith.constant 0 : i32
    %c0_i32_1 = arith.constant 0 : i32
    return %c0_i32, %c0_i32_0 : i32, i32
  }
  func.func @transform_7(%arg0: i32) -> (i32, i32, i32) {
    %c0_i32 = arith.constant 0 : i32
    %c0_i32_0 = arith.constant 0 : i32
    %c0_i32_1 = arith.constant 0 : i32
    return %arg0, %c0_i32, %c0_i32_0 : i32, i32, i32
  }
}

</mosaic_0001>

<llo_original>
// kernel: conv_block_forward.1
$region0: #{conv_block_forward.1}
  #allocation0 [shape = 'u32[]', space=smem, size = 0x4, offset = 0x4, fixed_abs, tag = 'smem constant byte address 0x4 - core index']
  #allocation1 [shape = 'u32[144,128]{1,0:T(1,128)}', space=vmem, size = 0x12000, scoped, tag = 'internal scratch']
  #allocation2 [shape = 'bf16[16,192]{1,0:T(16,128)(2,1)}', space=vmem, size = 0x2000, scoped, tag = 'scratch operand']
  #allocation3 [shape = 'bf16[16,192]{1,0:T(16,128)(2,1)}', space=vmem, size = 0x2000, scoped, tag = 'scratch operand']
  %s0 = inlined_call_operand.vmem [shape: bf16[2,16,64], index: 0, kind: input, shape index: {}]
  %s1 = inlined_call_operand.vmem [shape: bf16[192,64], index: 1, kind: input, shape index: {}]
  %s2 = inlined_call_operand.vmem [shape: f32[1,64], index: 2, kind: input, shape index: {}]
  %s3 = inlined_call_operand.vmem [shape: f32[1,64], index: 3, kind: input, shape index: {}]
  %s4 = inlined_call_operand.vmem [shape: bf16[192,128], index: 4, kind: input, shape index: {}]
  %s5 = inlined_call_operand.vmem [shape: f32[1,128], index: 5, kind: input, shape index: {}]
  %s6 = inlined_call_operand.vmem [shape: f32[1,128], index: 6, kind: input, shape index: {}]
  %s7 = inlined_call_operand.vmem [shape: f32[2,16,128], index: 7, kind: output, shape index: {}]
  %s8 = sld [smem:[#allocation0]]
  $region61: #{conv_block_forward.1} parent=0
    _
  %s10 = ssub.s32 1, %s8
  %s11 = scalar_select 0, %s10, %s8
  loop: start=0, step=1, limit=4
  $region2: #{conv_block_forward.1} parent=0 // loop_pre_header
    _
  $region3: #{conv_block_forward.1} parent=0 // loop_header
    %s13 = sphi 0, %s17
    %p14 = scmp.ge.s32.totalorder %s13, 4
    %s23 = sphi 0, %s25
    %s26 = sphi 0, %s23
    %s27 = sphi 0, %s26
    %s43 = sphi 0, %s27
    %s47 = sphi 0, %s47
    %s49 = sphi 0, %s47
    %s50 = sphi 0, %s49
    %s64 = sphi 0, %s50
    %s68 = sphi 0, %s68
    %s70 = sphi 0, %s68
    %s71 = sphi 0, %s70
    %s85 = sphi 0, %s71
    %s89 = sphi 0, %s89
    %s91 = sphi 0, %s89
    %s92 = sphi 0, %s91
    %s106 = sphi 0, %s92
    %s110 = sphi 0, %s110
    %s112 = sphi 0, %s110
    %s113 = sphi 0, %s112
    %s127 = sphi 0, %s113
    %s131 = sphi 0, %s131
    %s133 = sphi 0, %s131
    %s134 = sphi 0, %s133
    %s148 = sphi 0, %s134
    %s152 = sphi 0, %s152
    %s154 = sphi 0, %s152
    %s155 = sphi 0, %s154
    %s169 = sphi 0, %s155
    %s175 = sphi 0, %s177
    %s178 = sphi 0, %s175
    %s179 = sphi 0, %s178
    %s195 = sphi 0, %s179
  $region4: #{conv_block_forward.1} parent=0 // loop_header_branch
    %16 = sbr.rel (%p14) target = $region8
  $region5: #{conv_block_forward.1} parent=0 // loop_body
    %s18 = ssub.s32 %s13, 1
    %s19 = ssub.s32 %s13, 2
    %s20 = sadd.s32 %s13, 1
    %s21 = ssub.s32 %s13, %s20
    %p22 = scmp.eq.s32.totalorder %s21, 0
    %s24 = sadd.s32 %s23, 1
    %s25 = scalar_select %p22, %s23, %s24
    %p28 = pneg %p22
    %p29 = scmp.eq.s32.totalorder %s13, 1
    %p30 = por %p28, %p29
    %p31 = scmp.ne.s32.totalorder %s23, %s26
    %p32 = scmp.eq.s32.totalorder %s13, 0
    %p33 = por %p31, %p32
    %p34 = scmp.ne.s32.totalorder %s23, %s26
    %p35 = scmp.eq.s32.totalorder %s18, 1
    %p36 = por %p34, %p35
    %p37 = scmp.ne.s32.totalorder %s26, %s27
    %p38 = scmp.eq.s32.totalorder %s18, 0
    %p39 = por %p37, %p38
    %p40 = scmp.ne.s32.totalorder %s26, %s27
    %p41 = scmp.eq.s32.totalorder %s19, 1
    %p42 = por %p40, %p41
    %p44 = scmp.ne.s32.totalorder %s27, %s43
    %p45 = scmp.eq.s32.totalorder %s19, 0
    %p46 = por %p44, %p45
    %s48 = sadd.s32 %s47, 1
    %p51 = scmp.eq.s32.totalorder %s13, 1
    %p52 = scmp.ne.s32.totalorder %s47, %s49
    %p53 = scmp.eq.s32.totalorder %s13, 0
    %p54 = por %p52, %p53
    %p55 = scmp.ne.s32.totalorder %s47, %s49
    %p56 = scmp.eq.s32.totalorder %s18, 1
    %p57 = por %p55, %p56
    %p58 = scmp.ne.s32.totalorder %s49, %s50
    %p59 = scmp.eq.s32.totalorder %s18, 0
    %p60 = por %p58, %p59
    %p61 = scmp.ne.s32.totalorder %s49, %s50
    %p62 = scmp.eq.s32.totalorder %s19, 1
    %p63 = por %p61, %p62
    %p65 = scmp.ne.s32.totalorder %s50, %s64
    %p66 = scmp.eq.s32.totalorder %s19, 0
    %p67 = por %p65, %p66
    %s69 = sadd.s32 %s68, 1
    %p72 = scmp.eq.s32.totalorder %s13, 1
    %p73 = scmp.ne.s32.totalorder %s68, %s70
    %p74 = scmp.eq.s32.totalorder %s13, 0
    %p75 = por %p73, %p74
    %p76 = scmp.ne.s32.totalorder %s68, %s70
    %p77 = scmp.eq.s32.totalorder %s18, 1
    %p78 = por %p76, %p77
    %p79 = scmp.ne.s32.totalorder %s70, %s71
    %p80 = scmp.eq.s32.totalorder %s18, 0
    %p81 = por %p79, %p80
    %p82 = scmp.ne.s32.totalorder %s70, %s71
    %p83 = scmp.eq.s32.totalorder %s19, 1
    %p84 = por %p82, %p83
    %p86 = scmp.ne.s32.totalorder %s71, %s85
    %p87 = scmp.eq.s32.totalorder %s19, 0
    %p88 = por %p86, %p87
    %s90 = sadd.s32 %s89, 1
    %p93 = scmp.eq.s32.totalorder %s13, 1
    %p94 = scmp.ne.s32.totalorder %s89, %s91
    %p95 = scmp.eq.s32.totalorder %s13, 0
    %p96 = por %p94, %p95
    %p97 = scmp.ne.s32.totalorder %s89, %s91
    %p98 = scmp.eq.s32.totalorder %s18, 1
    %p99 = por %p97, %p98
    %p100 = scmp.ne.s32.totalorder %s91, %s92
    %p101 = scmp.eq.s32.totalorder %s18, 0
    %p102 = por %p100, %p101
    %p103 = scmp.ne.s32.totalorder %s91, %s92
    %p104 = scmp.eq.s32.totalorder %s19, 1
    %p105 = por %p103, %p104
    %p107 = scmp.ne.s32.totalorder %s92, %s106
    %p108 = scmp.eq.s32.totalorder %s19, 0
    %p109 = por %p107, %p108
    %s111 = sadd.s32 %s110, 1
    %p114 = scmp.eq.s32.totalorder %s13, 1
    %p115 = scmp.ne.s32.totalorder %s110, %s112
    %p116 = scmp.eq.s32.totalorder %s13, 0
    %p117 = por %p115, %p116
    %p118 = scmp.ne.s32.totalorder %s110, %s112
    %p119 = scmp.eq.s32.totalorder %s18, 1
    %p120 = por %p118, %p119
    %p121 = scmp.ne.s32.totalorder %s112, %s113
    %p122 = scmp.eq.s32.totalorder %s18, 0
    %p123 = por %p121, %p122
    %p124 = scmp.ne.s32.totalorder %s112, %s113
    %p125 = scmp.eq.s32.totalorder %s19, 1
    %p126 = por %p124, %p125
    %p128 = scmp.ne.s32.totalorder %s113, %s127
    %p129 = scmp.eq.s32.totalorder %s19, 0
    %p130 = por %p128, %p129
    %s132 = sadd.s32 %s131, 1
    %p135 = scmp.eq.s32.totalorder %s13, 1
    %p136 = scmp.ne.s32.totalorder %s131, %s133
    %p137 = scmp.eq.s32.totalorder %s13, 0
    %p138 = por %p136, %p137
    %p139 = scmp.ne.s32.totalorder %s131, %s133
    %p140 = scmp.eq.s32.totalorder %s18, 1
    %p141 = por %p139, %p140
    %p142 = scmp.ne.s32.totalorder %s133, %s134
    %p143 = scmp.eq.s32.totalorder %s18, 0
    %p144 = por %p142, %p143
    %p145 = scmp.ne.s32.totalorder %s133, %s134
    %p146 = scmp.eq.s32.totalorder %s19, 1
    %p147 = por %p145, %p146
    %p149 = scmp.ne.s32.totalorder %s134, %s148
    %p150 = scmp.eq.s32.totalorder %s19, 0
    %p151 = por %p149, %p150
    %s153 = sadd.s32 %s152, 1
    %p156 = scmp.eq.s32.totalorder %s13, 1
    %p157 = scmp.ne.s32.totalorder %s152, %s154
    %p158 = scmp.eq.s32.totalorder %s13, 0
    %p159 = por %p157, %p158
    %p160 = scmp.ne.s32.totalorder %s152, %s154
    %p161 = scmp.eq.s32.totalorder %s18, 1
    %p162 = por %p160, %p161
    %p163 = scmp.ne.s32.totalorder %s154, %s155
    %p164 = scmp.eq.s32.totalorder %s18, 0
    %p165 = por %p163, %p164
    %p166 = scmp.ne.s32.totalorder %s154, %s155
    %p167 = scmp.eq.s32.totalorder %s19, 1
    %p168 = por %p166, %p167
    %p170 = scmp.ne.s32.totalorder %s155, %s169
    %p171 = scmp.eq.s32.totalorder %s19, 0
    %p172 = por %p170, %p171
    %s173 = ssub.s32 %s13, %s20
    %p174 = scmp.eq.s32.totalorder %s173, 0
    %s176 = sadd.s32 %s175, 1
    %s177 = scalar_select %p174, %s175, %s176
    %p180 = pneg %p174
    %p181 = scmp.eq.s32.totalorder %s13, 1
    %p182 = por %p180, %p181
    %p183 = scmp.ne.s32.totalorder %s175, %s178
    %p184 = scmp.eq.s32.totalorder %s13, 0
    %p185 = por %p183, %p184
    %p186 = scmp.ne.s32.totalorder %s175, %s178
    %p187 = scmp.eq.s32.totalorder %s18, 1
    %p188 = por %p186, %p187
    %p189 = scmp.ne.s32.totalorder %s178, %s179
    %p190 = scmp.eq.s32.totalorder %s18, 0
    %p191 = por %p189, %p190
    %p192 = scmp.ne.s32.totalorder %s178, %s179
    %p193 = scmp.eq.s32.totalorder %s19, 1
    %p194 = por %p192, %p193
    %p196 = scmp.ne.s32.totalorder %s179, %s195
    %p197 = scmp.eq.s32.totalorder %s19, 0
    %p198 = por %p196, %p197
    %p199 = scmp.le.s32.totalorder 1, %s13
    %p200 = scmp.lt.s32.totalorder %s13, 3
    %p201 = pnand %p199, %p200
    %p202 = pneg %p201
    // Predicated region
    $region9: #{conv_block_forward.1} parent=5 // pred_check
      _
    $region10: #{conv_block_forward.1} parent=5 // pred_check_branch
      %204 = sbr.rel (%p201) target = $region12
    $region11: #{conv_block_forward.1} parent=5 // pred_region
      %s205 = ssub.s32 %s13, 1
      // Predicated region
      $region13: #{conv_block_forward.1} parent=11 // pred_check
        %p206 = pneg %p60
      $region14: #{conv_block_forward.1} parent=11 // pred_check_branch
        %208 = sbr.rel (%p206) target = $region16
      $region15: #{conv_block_forward.1} parent=11 // pred_region
        _
      $region16: #{conv_block_forward.1} parent=11 // pred_fallthru
        _
      // Predicated region
      $region17: #{conv_block_forward.1} parent=11 // pred_check
        %p209 = pneg %p81
      $region18: #{conv_block_forward.1} parent=11 // pred_check_branch
        %211 = sbr.rel (%p209) target = $region20
      $region19: #{conv_block_forward.1} parent=11 // pred_region
        _
      $region20: #{conv_block_forward.1} parent=11 // pred_fallthru
        _
      // Predicated region
      $region21: #{conv_block_forward.1} parent=11 // pred_check
        %p212 = pneg %p102
      $region22: #{conv_block_forward.1} parent=11 // pred_check_branch
        %214 = sbr.rel (%p212) target = $region24
      $region23: #{conv_block_forward.1} parent=11 // pred_region
        _
      $region24: #{conv_block_forward.1} parent=11 // pred_fallthru
        _
      // Predicated region
      $region25: #{conv_block_forward.1} parent=11 // pred_check
        %p215 = pneg %p123
      $region26: #{conv_block_forward.1} parent=11 // pred_check_branch
        %217 = sbr.rel (%p215) target = $region28
      $region27: #{conv_block_forward.1} parent=11 // pred_region
        _
      $region28: #{conv_block_forward.1} parent=11 // pred_fallthru
        _
      // Predicated region
      $region29: #{conv_block_forward.1} parent=11 // pred_check
        %p218 = pneg %p144
      $region30: #{conv_block_forward.1} parent=11 // pred_check_branch
        %220 = sbr.rel (%p218) target = $region32
      $region31: #{conv_block_forward.1} parent=11 // pred_region
        _
      $region32: #{conv_block_forward.1} parent=11 // pred_fallthru
        _
      // Predicated region
      $region33: #{conv_block_forward.1} parent=11 // pred_check
        %p221 = pneg %p165
      $region34: #{conv_block_forward.1} parent=11 // pred_check_branch
        %223 = sbr.rel (%p221) target = $region36
      $region35: #{conv_block_forward.1} parent=11 // pred_region
        _
      $region36: #{conv_block_forward.1} parent=11 // pred_fallthru
        _
    $region12: #{conv_block_forward.1} parent=5 // pred_fallthru
      _
    %p224 = scmp.lt.s32.totalorder %s13, 2
    // Predicated region
    $region37: #{conv_block_forward.1} parent=5 // pred_check
      %p225 = pneg %p224
    $region38: #{conv_block_forward.1} parent=5 // pred_check_branch
      %227 = sbr.rel (%p225) target = $region40
    $region39: #{conv_block_forward.1} parent=5 // pred_region
      // Predicated region
      $region41: #{conv_block_forward.1} parent=39 // pred_check
        %p228 = pneg %p33
      $region42: #{conv_block_forward.1} parent=39 // pred_check_branch
        %230 = sbr.rel (%p228) target = $region44
      $region43: #{conv_block_forward.1} parent=39 // pred_region
        %p231 = scmp.lt.s32.totalorder %s13, 1
        %s232 = scalar_select %p231, %s13, 1
        %s233 = smul.addr %s232, 2
        %s234 = smul.addr %s233, 4
        %s235 = scalar_lea.vmem %s0, %s234
      $region44: #{conv_block_forward.1} parent=39 // pred_fallthru
        _
    $region40: #{conv_block_forward.1} parent=5 // pred_fallthru
      _
    %p236 = scmp.le.s32.totalorder 1, %s13
    %p237 = scmp.lt.s32.totalorder %s13, 3
    %p238 = pnand %p236, %p237
    %p239 = pneg %p238
    // Predicated region
    $region45: #{conv_block_forward.1} parent=5 // pred_check
      _
    $region46: #{conv_block_forward.1} parent=5 // pred_check_branch
      %241 = sbr.rel (%p238) target = $region48
    $region47: #{conv_block_forward.1} parent=5 // pred_region
      %s242 = ssub.s32 %s13, 1
      %p243 = scmp.lt.s32.totalorder %s18, 1
      %s244 = scalar_select %p243, %s18, 1
      %s245 = smul.addr %s244, 2
      %s246 = smul.addr %s245, 4
      %s247 = scalar_lea.vmem %s0, %s246
      %p248 = pneg %p39
      %p249 = pneg %p36
      %p250 = pneg %p60
      %p251 = pneg %p57
      %p252 = pneg %p81
      %p253 = pneg %p78
      %p254 = pneg %p102
      %p255 = pneg %p99
      %p256 = pneg %p123
      %p257 = pneg %p120
      %p258 = pneg %p144
      %p259 = pneg %p141
      %p260 = pneg %p165
      %p261 = pneg %p162
      %p262 = pneg %p191
      %p263 = pneg %p188
      %p264 = scmp.lt.s32.totalorder %s18, 1
      %s265 = scalar_select %p264, %s18, 1
      %s266 = smul.addr %s265, 2
      %s267 = smul.addr %s266, 8
      %s268 = scalar_lea.vmem %s7, %s267
      %p269 = scmp.lt.s32.totalorder %s18, 1
      %s270 = scalar_select %p269, %s18, 1
      %s271 = smul.addr %s270, 2
      %s272 = smul.addr %s271, 4
      %s273 = scalar_lea.vmem %s0, %s272
      %p274 = scmp.lt.s32.totalorder %s18, 1
      %s275 = scalar_select %p274, %s18, 1
      %s276 = smul.addr %s275, 2
      %s277 = smul.addr %s276, 8
      %s278 = scalar_lea.vmem %s7, %s277
      %v280 = vld [vmem:[%s273] sm:$0xf]
      %v281 = vld [vmem:[%s273 + $0x4] sm:$0xf]
      %v282 = vunpack.c.l.bf16 %v280
      %v283 = vunpack.c.l.bf16 %v281
      %v284 = vlaneseq
      %v285 = vshrl.u32 %v284, 7
      %v286 = vadd.s32 %v285, 8
      %vm287 = vcmp.gt.s32.totalorder %v285, 0
      %vm288 = vcmp.gt.s32.totalorder %v286, 0
      %v289 = vrot.slane %v282, 7
      %v290 = vrot.slane %v283, 7
      %vm291 = vcmp.lt.s32.totalorder %v285, 1
      %v292 = vsel %vm291, %v289, %v290
      %v293 = vsel %vm291, %v290, %v289
      %v294 = vsel %vm287, %v293, 0.0
      %v295 = vsel %vm288, %v292, 0.0
      %vm296 = vcmp.lt.s32.totalorder %v285, 15
      %vm297 = vcmp.lt.s32.totalorder %v286, 15
      %v298 = vrot.slane %v282, 1
      %v299 = vrot.slane %v283, 1
      %vm300 = vcmp.lt.s32.totalorder %v285, 7
      %v301 = vsel %vm300, %v298, %v299
      %v302 = vsel %vm300, %v299, %v298
      %v303 = vsel %vm296, %v301, 0.0
      %v304 = vsel %vm297, %v302, 0.0
      %v305 = vpack.c.bf16 %v295, %v294
      %vm306 = vcmask 523264
      %307 = vst.msk [vmem:[#allocation2] sm:$0xff] %vm306, %v305
      %v310 = vunpack.c.l.b16 %v280
      %v311 = vunpack.c.l.b16 %v281
      %v312 = vpack.c.b16 %v311, %v310
      %313 = vrot.lane.b32.xlu0 %v312, 64
      %v314 = vpop.permute.xlu0 %313
      %vm316 = vcmask 1048064
      %317 = vst.msk [vmem:[#allocation2] sm:$0xff] %vm316, %v314
      %v318 = vpack.c.bf16 %v304, %v303
      %319 = vst.msk [vmem:[#allocation2 + $0x8] sm:$0xff] %vm306, %v318
      %v320 = vld [vmem:[#allocation2] sm:$0xff]
      %v321 = vld [vmem:[#allocation2 + $0x8] sm:$0xff]
      %v322 = vld [vmem:[%s1] sm:$0xf]
      %v323 = vld [vmem:[%s1 + $0x4] sm:$0xf]
      %v324 = vld [vmem:[%s1 + $0x8] sm:$0xf]
      %v325 = vld [vmem:[%s1 + $0xc] sm:$0xf]
      %v326 = vld [vmem:[%s1 + $0x10] sm:$0xf]
      %v327 = vld [vmem:[%s1 + $0x14] sm:$0xf]
      %v328 = vld [vmem:[%s1 + $0x18] sm:$0xf]
      %v329 = vld [vmem:[%s1 + $0x1c] sm:$0xf]
      %v330 = vld [vmem:[%s1 + $0x20] sm:$0xf]
      %v331 = vld [vmem:[%s1 + $0x24] sm:$0xf]
      %v332 = vld [vmem:[%s1 + $0x28] sm:$0xf]
      %v333 = vld [vmem:[%s1 + $0x2c] sm:$0xf]
      %v334 = vld [vmem:[%s1 + $0x30] sm:$0xf]
      %v335 = vld [vmem:[%s1 + $0x34] sm:$0xf]
      %v336 = vld [vmem:[%s1 + $0x38] sm:$0xf]
      %v337 = vld [vmem:[%s1 + $0x3c] sm:$0xf]
      %v338 = vld [vmem:[%s1 + $0x40] sm:$0xf]
      %v339 = vld [vmem:[%s1 + $0x44] sm:$0xf]
      %v340 = vld [vmem:[%s1 + $0x48] sm:$0xf]
      %v341 = vld [vmem:[%s1 + $0x4c] sm:$0xf]
      %v342 = vld [vmem:[%s1 + $0x50] sm:$0xf]
      %v343 = vld [vmem:[%s1 + $0x54] sm:$0xf]
      %v344 = vld [vmem:[%s1 + $0x58] sm:$0xf]
      %v345 = vld [vmem:[%s1 + $0x5c] sm:$0xf]
      %v370 = vunpack.c.l.b16 %v322
      %v371 = vunpack.c.l.b16 %v323
      %v372 = vunpack.c.l.b16 %v324
      %v373 = vunpack.c.l.b16 %v325
      %v374 = vunpack.c.l.b16 %v326
      %v375 = vunpack.c.l.b16 %v327
      %v376 = vunpack.c.l.b16 %v328
      %v377 = vunpack.c.l.b16 %v329
      %v378 = vunpack.c.l.b16 %v330
      %v379 = vunpack.c.l.b16 %v331
      %v380 = vunpack.c.l.b16 %v332
      %v381 = vunpack.c.l.b16 %v333
      %v382 = vunpack.c.l.b16 %v334
      %v383 = vunpack.c.l.b16 %v335
      %v384 = vunpack.c.l.b16 %v336
      %v385 = vunpack.c.l.b16 %v337
      %v386 = vunpack.c.l.b16 %v338
      %v387 = vunpack.c.l.b16 %v339
      %v388 = vunpack.c.l.b16 %v340
      %v389 = vunpack.c.l.b16 %v341
      %v390 = vunpack.c.l.b16 %v342
      %v391 = vunpack.c.l.b16 %v343
      %v392 = vunpack.c.l.b16 %v344
      %v393 = vunpack.c.l.b16 %v345
      %v394 = vpack.c.b16 %v371, %v370
      %v395 = vpack.c.b16 %v373, %v372
      %v396 = vpack.c.b16 %v375, %v374
      %v397 = vpack.c.b16 %v377, %v376
      %v398 = vpack.c.b16 %v379, %v378
      %v399 = vpack.c.b16 %v381, %v380
      %v400 = vpack.c.b16 %v383, %v382
      %v401 = vpack.c.b16 %v385, %v384
      %v402 = vpack.c.b16 %v387, %v386
      %v403 = vpack.c.b16 %v389, %v388
      %v404 = vpack.c.b16 %v391, %v390
      %v405 = vpack.c.b16 %v393, %v392
      %v419 = vsel %vm306, %v321, 0
      %421 = vmatprep.subr.bf16.mxu0 0
      %422 = vmatpush1.bf16.msra.mxu0 %v394
      %423 = vmatprep.subr.bf16.mxu0 0
      %424 = vmatpush1.bf16.msra.mxu0 %v395
      %425 = vmatprep.subr.bf16.mxu0 0
      %426 = vmatpush1.bf16.msra.mxu0 %v396
      %427 = vmatprep.subr.bf16.mxu0 0
      %428 = vmatpush1.bf16.msra.mxu0 %v397
      %429 = vmatprep.subr.bf16.mxu0 0
      %430 = vmatpush1.bf16.msra.mxu0 %v398
      %431 = vmatprep.subr.bf16.mxu0 0
      %432 = vmatpush1.bf16.msra.mxu0 %v399
      %433 = vmatprep.subr.bf16.mxu0 0
      %434 = vmatpush1.bf16.msra.mxu0 %v400
      %435 = vmatprep.subr.bf16.mxu0 0
      %436 = vmatpush1.bf16.msra.mxu0 %v401
      %437 = vmatprep.subr.bf16.mxu0 0
      %438 = vmatpush1.bf16.msra.mxu0 %v402
      %439 = vmatprep.subr.bf16.mxu0 0
      %440 = vmatpush1.bf16.msra.mxu0 %v403
      %441 = vmatprep.subr.bf16.mxu0 0
      %442 = vmatpush1.bf16.msra.mxu0 %v404
      %443 = vmatprep.subr.bf16.mxu0 0
      %444 = vmatpush1.bf16.msra.mxu0 %v405
      %445 = vmatprep.subr.bf16.mxu0 0
      %446 = vmatpush1.bf16.msra.mxu0 0
      %447 = vmatprep.subr.bf16.mxu0 0
      %448 = vmatpush1.bf16.msra.mxu0 0
      %449 = vmatprep.subr.bf16.mxu0 0
      %450 = vmatpush1.bf16.msra.mxu0 0
      %451 = vmatprep.subr.bf16.mxu0 0
      %452 = vmatpush1.bf16.msra.mxu0 0
      %453 = vmatprep.mubr.bf16.mxu0 %v419
      %454 = vmatmul.mubr.bf16.gmra.mrb[0].mxu0 %v320
      %v455 = vpop.f32.mrb[0].mxu0
      %v456 = vadd.f32 0.0, %v455
      %v457 = vpop.f32.mrb[0].mxu0
      %v458 = vpop.f32.mrb[0].mxu0
      %v459 = vadd.f32 0.0, %v458
      %v460 = vpop.f32.mrb[0].mxu0
      %461 = vdwg.mxu0
      %v462 = vld [vmem:[%s2] sm:$0x1]
      %v463 = vld [vmem:[%s3] sm:$0x1]
      %v464 = vsel %vm306, %v456, 0.0
      %v465 = vsel %vm306, %v459, 0.0
      %v466 = vadd.f32 %v464, %v465
      %467 = vadd.xlane.f32.xlu0 %v466
      %v468 = vpop.xlane.xlu0 %467
      %v469 = vrot.slane %v468, 4
      %v470 = vadd.f32 %v468, %v469
      %v471 = vrot.slane %v470, 2
      %v472 = vadd.f32 %v470, %v471
      %v473 = vrot.slane %v472, 1
      %v474 = vadd.f32 %v472, %v473
      %s475 = vtos %v474
      %v476 = vrcp.pop 1024.0
      %s477 = vtos %v476
      %s478 = smul.f32 %s475, %s477
      %v479 = vmul.f32 %v456, %v456
      %v480 = vmul.f32 %v459, %v459
      %v481 = vsel %vm306, %v479, 0.0
      %v482 = vsel %vm306, %v480, 0.0
      %v483 = vadd.f32 %v481, %v482
      %484 = vadd.xlane.f32.xlu0 %v483
      %v485 = vpop.xlane.xlu0 %484
      %v486 = vrot.slane %v485, 4
      %v487 = vadd.f32 %v485, %v486
      %v488 = vrot.slane %v487, 2
      %v489 = vadd.f32 %v487, %v488
      %v490 = vrot.slane %v489, 1
      %v491 = vadd.f32 %v489, %v490
      %s492 = vtos %v491
      %v493 = vrcp.pop 1024.0
      %s494 = vtos %v493
      %s495 = smul.f32 %s492, %s494
      %s496 = smul.f32 %s478, %s478
      %s497 = ssub.f32 %s495, %s496
      %s498 = smax.f32 %s497, 0.0
      %s499 = sadd.f32 %s498, 1e-05
      %v500 = vstv %s499
      %v501 = vrsqrt.pop %v500
      %s502 = vtos %v501
      %v503 = vstv %s478
      %v504 = vsub.f32 %v456, %v503
      %v505 = vsub.f32 %v459, %v503
      %v506 = vstv %s502
      %v507 = vmul.f32 %v504, %v506
      %v508 = vmul.f32 %v505, %v506
      %v510 = vlaneseq
      %v511 = vshrl.u32 %v510, 7
      %v512 = vsub.s32 0, %v511
      %v513 = vrot.slane %v462, %v512
      %v515 = vmul.f32 %v507, %v513
      %v516 = vmul.f32 %v508, %v513
      %v518 = vlaneseq
      %v519 = vshrl.u32 %v518, 7
      %v520 = vsub.s32 0, %v519
      %v521 = vrot.slane %v463, %v520
      %v523 = vadd.f32 %v515, %v521
      %v524 = vadd.f32 %v516, %v521
      %v525 = vmul.f32 %v523, 0.5
      %v526 = vmul.f32 %v524, 0.5
      %v527 = vmul.f32 %v523, 0.70710677
      %v528 = vmul.f32 %v524, 0.70710677
      %v529 = vand.u32 2147483647, %v527
      %v530 = vand.u32 2147483647, %v528
      %v531 = vmul.f32 %v529, 0.3275911
      %v532 = vmul.f32 %v530, 0.3275911
      %v533 = vadd.f32 %v531, 1.0
      %v534 = vadd.f32 %v532, 1.0
      %v535 = vrcp.pop %v533
      %v536 = vrcp.pop %v534
      %v537 = vmul.f32 %v535, 1.0614054
      %v538 = vmul.f32 %v536, 1.0614054
      %v539 = vadd.f32 %v537, -1.4531521
      %v540 = vadd.f32 %v538, -1.4531521
      %v541 = vmul.f32 %v539, %v535
      %v542 = vmul.f32 %v540, %v536
      %v543 = vadd.f32 %v541, 1.4214138
      %v544 = vadd.f32 %v542, 1.4214138
      %v545 = vmul.f32 %v543, %v535
      %v546 = vmul.f32 %v544, %v536
      %v547 = vadd.f32 %v545, -0.28449672
      %v548 = vadd.f32 %v546, -0.28449672
      %v549 = vmul.f32 %v547, %v535
      %v550 = vmul.f32 %v548, %v536
      %v551 = vadd.f32 %v549, 0.2548296
      %v552 = vadd.f32 %v550, 0.2548296
      %v553 = vmul.f32 %v551, %v535
      %v554 = vmul.f32 %v552, %v536
      %v555 = vsub.f32 0.0, %v529
      %v556 = vsub.f32 0.0, %v530
      %v557 = vmul.f32 %v555, %v529
      %v558 = vmul.f32 %v556, %v530
      %v559 = vmul.f32 %v557, 1.442695
      %v560 = vpow.pop %v559
      %v561 = vmul.f32 %v558, 1.442695
      %v562 = vpow.pop %v561
      %v563 = vmul.f32 %v553, %v560
      %v564 = vmul.f32 %v554, %v562
      %v565 = vsub.f32 1.0, %v563
      %v566 = vsub.f32 1.0, %v564
      %vm567 = vcmp.lt.f32.partialorder %v527, 0.0
      %vm568 = vcmp.lt.f32.partialorder %v528, 0.0
      %v569 = vsub.f32 0.0, %v565
      %v570 = vsub.f32 0.0, %v566
      %v571 = vsel %vm567, %v569, %v565
      %v572 = vsel %vm568, %v570, %v566
      %v573 = vadd.f32 %v571, 1.0
      %v574 = vadd.f32 %v572, 1.0
      %v575 = vmul.f32 %v525, %v573
      %v576 = vmul.f32 %v526, %v574
      %v577 = vrot.slane %v575, 7
      %v578 = vrot.slane %v576, 7
      %v579 = vsel %vm291, %v577, %v578
      %v580 = vsel %vm291, %v578, %v577
      %v581 = vsel %vm287, %v580, 0.0
      %v582 = vsel %vm288, %v579, 0.0
      %v583 = vrot.slane %v575, 1
      %v584 = vrot.slane %v576, 1
      %v585 = vsel %vm300, %v583, %v584
      %v586 = vsel %vm300, %v584, %v583
      %v587 = vsel %vm296, %v585, 0.0
      %v588 = vsel %vm297, %v586, 0.0
      %v589 = vpack.c.bf16 %v582, %v581
      %590 = vst.msk [vmem:[#allocation3] sm:$0xff] %vm306, %v589
      %v591 = vpack.c.bf16 %v576, %v575
      %593 = vrot.lane.b32.xlu0 %v591, 64
      %v594 = vpop.permute.xlu0 %593
      %596 = vst.msk [vmem:[#allocation3] sm:$0xff] %vm316, %v594
      %v597 = vpack.c.bf16 %v588, %v587
      %598 = vst.msk [vmem:[#allocation3 + $0x8] sm:$0xff] %vm306, %v597
      %v599 = vld [vmem:[#allocation3] sm:$0xff]
      %v600 = vld [vmem:[#allocation3 + $0x8] sm:$0xff]
      %v601 = vld [vmem:[%s4] sm:$0xf]
      %v602 = vld [vmem:[%s4 + $0x4] sm:$0xf]
      %v603 = vld [vmem:[%s4 + $0x8] sm:$0xf]
      %v604 = vld [vmem:[%s4 + $0xc] sm:$0xf]
      %v605 = vld [vmem:[%s4 + $0x10] sm:$0xf]
      %v606 = vld [vmem:[%s4 + $0x14] sm:$0xf]
      %v607 = vld [vmem:[%s4 + $0x18] sm:$0xf]
      %v608 = vld [vmem:[%s4 + $0x1c] sm:$0xf]
      %v609 = vld [vmem:[%s4 + $0x20] sm:$0xf]
      %v610 = vld [vmem:[%s4 + $0x24] sm:$0xf]
      %v611 = vld [vmem:[%s4 + $0x28] sm:$0xf]
      %v612 = vld [vmem:[%s4 + $0x2c] sm:$0xf]
      %v613 = vld [vmem:[%s4 + $0x30] sm:$0xf]
      %v614 = vld [vmem:[%s4 + $0x34] sm:$0xf]
      %v615 = vld [vmem:[%s4 + $0x38] sm:$0xf]
      %v616 = vld [vmem:[%s4 + $0x3c] sm:$0xf]
      %v617 = vld [vmem:[%s4 + $0x40] sm:$0xf]
      %v618 = vld [vmem:[%s4 + $0x44] sm:$0xf]
      %v619 = vld [vmem:[%s4 + $0x48] sm:$0xf]
      %v620 = vld [vmem:[%s4 + $0x4c] sm:$0xf]
      %v621 = vld [vmem:[%s4 + $0x50] sm:$0xf]
      %v622 = vld [vmem:[%s4 + $0x54] sm:$0xf]
      %v623 = vld [vmem:[%s4 + $0x58] sm:$0xf]
      %v624 = vld [vmem:[%s4 + $0x5c] sm:$0xf]
      %v649 = vunpack.c.l.b16 %v601
      %v650 = vunpack.c.l.b16 %v602
      %v651 = vunpack.c.l.b16 %v603
      %v652 = vunpack.c.l.b16 %v604
      %v653 = vunpack.c.l.b16 %v605
      %v654 = vunpack.c.l.b16 %v606
      %v655 = vunpack.c.l.b16 %v607
      %v656 = vunpack.c.l.b16 %v608
      %v657 = vunpack.c.l.b16 %v609
      %v658 = vunpack.c.l.b16 %v610
      %v659 = vunpack.c.l.b16 %v611
      %v660 = vunpack.c.l.b16 %v612
      %v661 = vunpack.c.l.b16 %v613
      %v662 = vunpack.c.l.b16 %v614
      %v663 = vunpack.c.l.b16 %v615
      %v664 = vunpack.c.l.b16 %v616
      %v665 = vunpack.c.l.b16 %v617
      %v666 = vunpack.c.l.b16 %v618
      %v667 = vunpack.c.l.b16 %v619
      %v668 = vunpack.c.l.b16 %v620
      %v669 = vunpack.c.l.b16 %v621
      %v670 = vunpack.c.l.b16 %v622
      %v671 = vunpack.c.l.b16 %v623
      %v672 = vunpack.c.l.b16 %v624
      %v673 = vpack.c.b16 %v650, %v649
      %v674 = vpack.c.b16 %v652, %v651
      %v675 = vpack.c.b16 %v654, %v653
      %v676 = vpack.c.b16 %v656, %v655
      %v677 = vpack.c.b16 %v658, %v657
      %v678 = vpack.c.b16 %v660, %v659
      %v679 = vpack.c.b16 %v662, %v661
      %v680 = vpack.c.b16 %v664, %v663
      %v681 = vpack.c.b16 %v666, %v665
      %v682 = vpack.c.b16 %v668, %v667
      %v683 = vpack.c.b16 %v670, %v669
      %v684 = vpack.c.b16 %v672, %v671
      %v698 = vsel %vm306, %v600, 0
      %700 = vmatprep.subr.bf16.mxu0 0
      %701 = vmatpush1.bf16.msra.mxu0 %v673
      %702 = vmatprep.subr.bf16.mxu0 0
      %703 = vmatpush1.bf16.msra.mxu0 %v674
      %704 = vmatprep.subr.bf16.mxu0 0
      %705 = vmatpush1.bf16.msra.mxu0 %v675
      %706 = vmatprep.subr.bf16.mxu0 0
      %707 = vmatpush1.bf16.msra.mxu0 %v676
      %708 = vmatprep.subr.bf16.mxu0 0
      %709 = vmatpush1.bf16.msra.mxu0 %v677
      %710 = vmatprep.subr.bf16.mxu0 0
      %711 = vmatpush1.bf16.msra.mxu0 %v678
      %712 = vmatprep.subr.bf16.mxu0 0
      %713 = vmatpush1.bf16.msra.mxu0 %v679
      %714 = vmatprep.subr.bf16.mxu0 0
      %715 = vmatpush1.bf16.msra.mxu0 %v680
      %716 = vmatprep.subr.bf16.mxu0 0
      %717 = vmatpush1.bf16.msra.mxu0 %v681
      %718 = vmatprep.subr.bf16.mxu0 0
      %719 = vmatpush1.bf16.msra.mxu0 %v682
      %720 = vmatprep.subr.bf16.mxu0 0
      %721 = vmatpush1.bf16.msra.mxu0 %v683
      %722 = vmatprep.subr.bf16.mxu0 0
      %723 = vmatpush1.bf16.msra.mxu0 %v684
      %724 = vmatprep.subr.bf16.mxu0 0
      %725 = vmatpush1.bf16.msra.mxu0 0
      %726 = vmatprep.subr.bf16.mxu0 0
      %727 = vmatpush1.bf16.msra.mxu0 0
      %728 = vmatprep.subr.bf16.mxu0 0
      %729 = vmatpush1.bf16.msra.mxu0 0
      %730 = vmatprep.subr.bf16.mxu0 0
      %731 = vmatpush1.bf16.msra.mxu0 0
      %732 = vmatprep.mubr.bf16.mxu0 %v698
      %733 = vmatmul.mubr.bf16.gmra.mrb[0].mxu0 %v599
      %v734 = vpop.f32.mrb[0].mxu0
      %v735 = vadd.f32 0.0, %v734
      %v736 = vpop.f32.mrb[0].mxu0
      %v737 = vpop.f32.mrb[0].mxu0
      %v738 = vadd.f32 0.0, %v737
      %v739 = vpop.f32.mrb[0].mxu0
      %740 = vdwg.mxu0
      %v741 = vld [vmem:[%s5] sm:$0x1]
      %v742 = vld [vmem:[%s6] sm:$0x1]
      %v743 = vadd.f32 %v735, %v738
      %744 = vadd.xlane.f32.xlu0 %v743
      %v745 = vpop.xlane.xlu0 %744
      %v746 = vrot.slane %v745, 4
      %v747 = vadd.f32 %v745, %v746
      %v748 = vrot.slane %v747, 2
      %v749 = vadd.f32 %v747, %v748
      %v750 = vrot.slane %v749, 1
      %v751 = vadd.f32 %v749, %v750
      %s752 = vtos %v751
      %v753 = vrcp.pop 2048.0
      %s754 = vtos %v753
      %s755 = smul.f32 %s752, %s754
      %v756 = vmul.f32 %v735, %v735
      %v757 = vmul.f32 %v738, %v738
      %v758 = vadd.f32 %v756, %v757
      %759 = vadd.xlane.f32.xlu0 %v758
      %v760 = vpop.xlane.xlu0 %759
      %v761 = vrot.slane %v760, 4
      %v762 = vadd.f32 %v760, %v761
      %v763 = vrot.slane %v762, 2
      %v764 = vadd.f32 %v762, %v763
      %v765 = vrot.slane %v764, 1
      %v766 = vadd.f32 %v764, %v765
      %s767 = vtos %v766
      %v768 = vrcp.pop 2048.0
      %s769 = vtos %v768
      %s770 = smul.f32 %s767, %s769
      %s771 = smul.f32 %s755, %s755
      %s772 = ssub.f32 %s770, %s771
      %s773 = smax.f32 %s772, 0.0
      %s774 = sadd.f32 %s773, 1e-05
      %v775 = vstv %s774
      %v776 = vrsqrt.pop %v775
      %s777 = vtos %v776
      %v778 = vstv %s755
      %v779 = vsub.f32 %v735, %v778
      %v780 = vsub.f32 %v738, %v778
      %v781 = vstv %s777
      %v782 = vmul.f32 %v779, %v781
      %v783 = vmul.f32 %v780, %v781
      %v785 = vlaneseq
      %v786 = vshrl.u32 %v785, 7
      %v787 = vsub.s32 0, %v786
      %v788 = vrot.slane %v741, %v787
      %v790 = vmul.f32 %v782, %v788
      %v791 = vmul.f32 %v783, %v788
      %v793 = vlaneseq
      %v794 = vshrl.u32 %v793, 7
      %v795 = vsub.s32 0, %v794
      %v796 = vrot.slane %v742, %v795
      %v798 = vadd.f32 %v790, %v796
      %v799 = vadd.f32 %v791, %v796
      %800 = vst [vmem:[%s278] sm:$0xff] %v798
      %801 = vst [vmem:[%s278 + $0x8] sm:$0xff] %v799
      %p802 = scmp.lt.s32.totalorder %s18, 1
      %s803 = scalar_select %p802, %s18, 1
      %s804 = smul.addr %s803, 2
      %s805 = smul.addr %s804, 8
      %s806 = scalar_lea.vmem %s7, %s805
      // Predicated region
      $region49: #{conv_block_forward.1} parent=47 // pred_check
        %p807 = pneg %p188
      $region50: #{conv_block_forward.1} parent=47 // pred_check_branch
        %809 = sbr.rel (%p807) target = $region52
      $region51: #{conv_block_forward.1} parent=47 // pred_region
        _
      $region52: #{conv_block_forward.1} parent=47 // pred_fallthru
        _
    $region48: #{conv_block_forward.1} parent=5 // pred_fallthru
      _
    %p810 = scmp.le.s32.totalorder 2, %s13
    // Predicated region
    $region53: #{conv_block_forward.1} parent=5 // pred_check
      %p811 = pneg %p810
    $region54: #{conv_block_forward.1} parent=5 // pred_check_branch
      %813 = sbr.rel (%p811) target = $region56
    $region55: #{conv_block_forward.1} parent=5 // pred_region
      %s814 = ssub.s32 %s13, 2
      // Predicated region
      $region57: #{conv_block_forward.1} parent=55 // pred_check
        %p815 = pneg %p194
      $region58: #{conv_block_forward.1} parent=55 // pred_check_branch
        %817 = sbr.rel (%p815) target = $region60
      $region59: #{conv_block_forward.1} parent=55 // pred_region
        %p818 = scmp.lt.s32.totalorder %s19, 1
        %s819 = scalar_select %p818, %s19, 1
        %s820 = smul.addr %s819, 2
        %s821 = smul.addr %s820, 8
        %s822 = scalar_lea.vmem %s7, %s821
      $region60: #{conv_block_forward.1} parent=55 // pred_fallthru
        _
    $region56: #{conv_block_forward.1} parent=5 // pred_fallthru
      _
  $region6: #{conv_block_forward.1} parent=0 // loop_footer
    %s17 = sadd.s32 1, %s13
  $region7: #{conv_block_forward.1} parent=0 // loop_footer_branch
    %12 = sbr.rel target = $region3
  $region8: #{conv_block_forward.1} parent=0 // loop_exit
    _

</llo_original>
